<compile_context>
chip_gen: v7x
topology: tpu7x:2x2x1
jax: 0.10.0
libtpu: 0.0.40
codegen_flags: <defaults>
</compile_context>

<pallas_src>
import jax
import jax.numpy as jnp
from jax.experimental import pallas as pl
from jax.experimental.pallas import tpu as pltpu


_TARGET_TILE_BYTES = 4 * 1024 * 1024   # ~4 MiB data tile (good on v6e/v7x, safe on v5e
                                       # once vmem_limit_bytes is raised below)
_VMEM_LIMIT_BYTES = 48 << 20           # covers 2x(in)+2x(out) 4 MiB buffers + scale/bias


def _norm_kernel(sb_ref, x_ref, o_ref):
    # sb_ref: (TM, 2) packed [scale | bias] columns (compute dtype).
    # x_ref / o_ref: (TM, TN) tile of the flattened (N*C, H*W) image.
    scale = sb_ref[:, 0:1]
    bias = sb_ref[:, 1:2]
    x = x_ref[...].astype(scale.dtype)
    o_ref[...] = (x * scale + bias).astype(o_ref.dtype)


def _pick_block(rows, cols, itemsize, target_bytes=_TARGET_TILE_BYTES):
    """Pick a lane-dense (TM, TN) block hard-capped at ~target_bytes.

    Blocks are either full-extent or (8,128)-aligned; ragged tails are handled
    by pl.cdiv grids (out-of-bounds reads are padded, writes masked), so no
    shape can force a VMEM-busting tile.
    """
    # TN: full H*W if an 8-row strip of it fits the budget (full-extent blocks
    # are always legal and lane-dense); otherwise a fixed multiple of 128.
    max_tn = max(128, (target_bytes // (8 * itemsize)) // 128 * 128)
    tn = cols if cols <= max_tn else max_tn

    # TM: multiple of 8 so tm * tn * itemsize <= target_bytes, or the full row
    # extent when that is already within budget.
    tm_cap = max(8, (target_bytes // (tn * itemsize)) // 8 * 8)
    tm = rows if rows <= tm_cap else tm_cap

    # v7x megacore: for non-trivial inputs make sure at least one "parallel"
    # grid axis has >=2 programs so both TensorCores share the stream.
    if rows >= 16 and pl.cdiv(rows, tm) < 2 and pl.cdiv(cols, tn) < 2:
        half = (rows + 1) // 2
        tm = max(8, ((half + 7) // 8) * 8)

    return tm, tn


def normalization(img, mean, std):
    """img: (N, C, H, W); mean, std: (C,). Returns (img - mean) / std per channel."""
    N, C, H, W = img.shape
    rows, cols = N * C, H * W
    x2d = img.reshape(rows, cols)

    # Per-channel FMA coefficients: out = x * (1/std) + (-mean/std), computed
    # once in f32 and replicated over the batch (row = n*C + c). bf16 images
    # keep the FMA in bf16 (native on v6e/v7x VPUs; output is bf16 anyway).
    compute_dtype = img.dtype if img.dtype == jnp.bfloat16 else jnp.float32
    mean32 = mean.astype(jnp.float32)
    std32 = std.astype(jnp.float32)
    scale = jnp.tile(1.0 / std32, N)
    bias = jnp.tile(-mean32 / std32, N)
    sb = jnp.stack([scale, bias], axis=1).astype(compute_dtype)   # (rows, 2)

    itemsize = jnp.dtype(img.dtype).itemsize
    tm, tn = _pick_block(rows, cols, itemsize)
    grid = (pl.cdiv(rows, tm), pl.cdiv(cols, tn))

    out2d = pl.pallas_call(
        _norm_kernel,
        out_shape=jax.ShapeDtypeStruct((rows, cols), img.dtype),
        grid_spec=pl.GridSpec(
            grid=grid,
            in_specs=[
                pl.BlockSpec((tm, 2), lambda i, j: (i, 0)),    # packed scale/bias
                pl.BlockSpec((tm, tn), lambda i, j: (i, j)),   # image tile
            ],
            out_specs=pl.BlockSpec((tm, tn), lambda i, j: (i, j)),
        ),
        compiler_params=pltpu.CompilerParams(
            dimension_semantics=("parallel", "parallel"),
            vmem_limit_bytes=_VMEM_LIMIT_BYTES,
        ),
        cost_estimate=pl.CostEstimate(
            flops=2 * rows * cols,
            transcendentals=0,
            bytes_accessed=2 * rows * cols * itemsize + sb.size * sb.dtype.itemsize,
        ),
    )(sb, x2d)

    return out2d.reshape(N, C, H, W)


if __name__ == "__main__":
    key = jax.random.PRNGKey(0)
    N, C, H, W = 2, 4, 16, 16

    k_img, _ = jax.random.split(key)
    img = jax.random.normal(k_img, (N, C, H, W), dtype=jnp.float32)

    # Deterministic per-channel mean/std (as the module's __init__ would hold).
    mean = jnp.array([0.485, 0.456, 0.406, 0.5], dtype=jnp.float32)
    std = jnp.array([0.229, 0.224, 0.225, 0.25], dtype=jnp.float32)

    out = normalization(img, mean, std)
    jax.block_until_ready(out)

    # Reference check against plain JAX (mirrors the PyTorch forward).
    # x*(1/s) + (-m/s) differs from (x-m)/s by ~1 ulp, hence the relaxed tol.
    ref = (img - mean[None, :, None, None]) / std[None, :, None, None]
    assert jnp.allclose(out, ref, atol=1e-5, rtol=1e-5)

    print("KERNEL_OK")
</pallas_src>

<mosaic_0001>
module attributes {stable_mosaic.version = 11 : i64} {
  func.func @_norm_kernel(%arg0: i32, %arg1: i32, %arg2: memref<8x2xf32, #tpu.memory_space<vmem>>, %arg3: memref<8x256xf32, #tpu.memory_space<vmem>>, %arg4: memref<8x256xf32, #tpu.memory_space<vmem>>) attributes {dimension_semantics = [#tpu.dimension_semantics<parallel>, #tpu.dimension_semantics<parallel>], iteration_bounds = array<i64: 1, 1>, scalar_prefetch = 0 : i64, scratch_operands = 0 : i64, tpu.core_type = #tpu.core_type<tc>, window_params = [{transform_indices = @transform_0, window_bounds = array<i64: 8, 2>}, {transform_indices = @transform_1, window_bounds = array<i64: 8, 256>}, {transform_indices = @transform_2, window_bounds = array<i64: 8, 256>}]} {
    %c0 = arith.constant 0 : index
    %c0_0 = arith.constant 0 : index
    %0 = vector.load %arg2[%c0, %c0_0] : memref<8x2xf32, #tpu.memory_space<vmem>>, vector<8x1xf32>
    %c0_1 = arith.constant 0 : index
    %c1 = arith.constant 1 : index
    %1 = vector.load %arg2[%c0_1, %c1] : memref<8x2xf32, #tpu.memory_space<vmem>>, vector<8x1xf32>
    %c0_2 = arith.constant 0 : index
    %c0_3 = arith.constant 0 : index
    %2 = vector.load %arg3[%c0_2, %c0_3] : memref<8x256xf32, #tpu.memory_space<vmem>>, vector<8x256xf32>
    %3 = vector.broadcast %0 : vector<8x1xf32> to vector<8x256xf32>
    %4 = arith.mulf %2, %3 : vector<8x256xf32>
    %5 = vector.broadcast %1 : vector<8x1xf32> to vector<8x256xf32>
    %6 = arith.addf %4, %5 : vector<8x256xf32>
    %c0_4 = arith.constant 0 : index
    %c0_5 = arith.constant 0 : index
    %7 = vector.load %arg4[%c0_4, %c0_5] : memref<8x256xf32, #tpu.memory_space<vmem>>, vector<8x256xf32>
    tpu.vector_store %arg4[%c0_4, %c0_5], %6 {strides = array<i32>} : memref<8x256xf32, #tpu.memory_space<vmem>>, vector<8x256xf32>,
    return
  }
  func.func @transform_0(%arg0: i32, %arg1: i32) -> (i32, i32) {
    %c0_i32 = arith.constant 0 : i32
    %c0_i32_0 = arith.constant 0 : i32
    return %arg0, %c0_i32 : i32, i32
  }
  func.func @transform_1(%arg0: i32, %arg1: i32) -> (i32, i32) {
    %c0_i32 = arith.constant 0 : i32
    return %arg0, %arg1 : i32, i32
  }
  func.func @transform_2(%arg0: i32, %arg1: i32) -> (i32, i32) {
    %c0_i32 = arith.constant 0 : i32
    return %arg0, %arg1 : i32, i32
  }
}

</mosaic_0001>

<llo_original>
// kernel: tpu_custom_call.1
$region0: #{tpu_custom_call.1}
  #allocation0 [shape = 'u32[]', space=smem, size = 0x4, offset = 0x4, fixed_abs, tag = 'smem constant byte address 0x4 - core index']
  #allocation1 [shape = 'u32[144,128]{1,0:T(1,128)}', space=vmem, size = 0x12000, scoped, tag = 'internal scratch']
  %s0 = inlined_call_operand.vmem [shape: f32[8,2], index: 0, kind: input, shape index: {}]
  %s1 = inlined_call_operand.hbm [shape: f32[8,256], index: 1, kind: input, shape index: {}]
  %s2 = inlined_call_operand.hbm [shape: f32[8,256], index: 2, kind: output, shape index: {}]
  %s3 = sld [smem:[#allocation0]]
  $region22: #{tpu_custom_call.1} parent=0
    _
  %s5 = ssub.s32 1, %s3
  %s6 = scalar_select 0, %s5, %s3
  $region1: #{tpu_custom_call.1} parent=0
    #allocation2 [shape = 'u8[8192]{0}', space=vmem, size = 0x2000, scoped, tag = 'input window, operand 1, single buffered']
    #allocation3 [shape = 's32[1]{0}', space=sflag, size = 0x4, scoped, tag = 'scoped memory for tpu_custom_call.1']
    #allocation4 [shape = 's32[1]{0}', space=sflag, size = 0x4, scoped, tag = 'scoped memory for tpu_custom_call.1']
    #allocation5 [shape = 'u8[8192]{0}', space=vmem, size = 0x2000, scoped, tag = 'output window, operand 0, single buffered']
    %7 = vsyncpa [#allocation3], 0
    %8 = vsyncpa [#allocation4], 0
    // Predicated region
    $region2: #{tpu_custom_call.1} parent=1 // pred_check
      _
    $region3: #{tpu_custom_call.1} parent=1 // pred_check_branch
      %10 = sbr.rel (0) target = $region5
    $region4: #{tpu_custom_call.1} parent=1 // pred_region
      _
    $region5: #{tpu_custom_call.1} parent=1 // pred_fallthru
      _
    // Predicated region
    $region6: #{tpu_custom_call.1} parent=1 // pred_check
      _
    $region7: #{tpu_custom_call.1} parent=1 // pred_check_branch
      %12 = sbr.rel (0) target = $region9
    $region8: #{tpu_custom_call.1} parent=1 // pred_region
      %s14 = ssub.s32 256, 256
      %15 = vsyncadd [#allocation3], %s14
      %s17 = sshll.u32 [#allocation2], 4
      %s18 = int_to_ptr.vmem [resolvable:$true] %s17
      %20 = dma.hbm_to_vmem [thread:$0]  %s1, 256, %s18, [#allocation3]
    $region9: #{tpu_custom_call.1} parent=1 // pred_fallthru
      _
    // Predicated region
    $region10: #{tpu_custom_call.1} parent=1 // pred_check
      _
    $region11: #{tpu_custom_call.1} parent=1 // pred_check_branch
      %22 = sbr.rel (0) target = $region13
    $region12: #{tpu_custom_call.1} parent=1 // pred_region
      %23 = dma.done [#allocation3], 256
    $region13: #{tpu_custom_call.1} parent=1 // pred_fallthru
      _
    %v24 = vld [vmem:[%s0] sm:$0xff]
    %v25 = vld [vmem:[#allocation2] sm:$0xff]
    %v26 = vld [vmem:[#allocation2 + $0x8] sm:$0xff]
    %28 = vset.pattern.permute.xlu0 0
    %29 = vperm.xlu0 %28, %v24
    %v30 = vpop.permute.xlu0 %29
    %v32 = vmul.f32 %v25, %v30
    %v33 = vmul.f32 %v26, %v30
    %34 = vset.pattern.permute.xlu0 1
    %35 = vperm.xlu0 %34, %v24
    %v36 = vpop.permute.xlu0 %35
    %v38 = vadd.f32 %v32, %v36
    %v39 = vadd.f32 %v33, %v36
    %40 = vst [vmem:[#allocation5] sm:$0xff] %v38
    %41 = vst [vmem:[#allocation5 + $0x8] sm:$0xff] %v39
    // Predicated region
    $region14: #{tpu_custom_call.1} parent=1 // pred_check
      _
    $region15: #{tpu_custom_call.1} parent=1 // pred_check_branch
      %43 = sbr.rel (0) target = $region17
    $region16: #{tpu_custom_call.1} parent=1 // pred_region
      %s45 = ssub.s32 256, 256
      %46 = vsyncadd [#allocation4], %s45
      %s48 = sshll.u32 [#allocation5], 4
      %s49 = int_to_ptr.vmem [resolvable:$true] %s48
      %51 = dma.vmem_to_hbm [thread:$0]  %s49, 256, %s2, [#allocation4]
    $region17: #{tpu_custom_call.1} parent=1 // pred_fallthru
      _
    // Predicated region
    $region18: #{tpu_custom_call.1} parent=1 // pred_check
      _
    $region19: #{tpu_custom_call.1} parent=1 // pred_check_branch
      %53 = sbr.rel (0) target = $region21
    $region20: #{tpu_custom_call.1} parent=1 // pred_region
      %54 = dma.done [#allocation4], 256
    $region21: #{tpu_custom_call.1} parent=1 // pred_fallthru
      _
    %55 = vsyncpa [#allocation3], 1
    %56 = vsyncpa [#allocation4], 1

</llo_original>
